<compile_context>
chip_gen: v6e
topology: v6e:2x2x1
jax: 0.10.0
libtpu: 0.0.40
codegen_flags: <defaults>
</compile_context>

<pallas_src>
import jax
import jax.numpy as jnp
from jax import lax
from jax.experimental import pallas as pl
from jax.experimental.pallas import tpu as pltpu

# ---- module hyper-parameters (from the PyTorch module's __init__) ----
VOCAB_SIZE = 4          # len(word_dict) = {'[PAD]','[CLS]','[SEP]','[MASK]'}
N_SEGMENTS = 2          # n_segements
D_MODEL    = 32         # d_model
MAXLEN     = 16         # maxlen
LN_EPS     = 1e-5       # nn.LayerNorm default eps


def _embedding_kernel(ids_ref, seg_ref, pos_ref, tok_ref, segt_ref,
                      gamma_ref, beta_ref, out_ref):
    # Per-batch tile: ids/seg are (S, 1) int32; pos is (S, D) f32.
    ids  = ids_ref[...]
    segs = seg_ref[...]

    # Token + segment "gather" as a small exact-f32 weighted sum on the VPU
    # (tiny vocab -> cheaper than an MXU round-trip); pos is the accumulator.
    emb = pos_ref[...]
    for v in range(tok_ref.shape[0]):
        emb = emb + (ids == v).astype(jnp.float32) * tok_ref[v:v + 1, :]
    for s in range(segt_ref.shape[0]):
        emb = emb + (segs == s).astype(jnp.float32) * segt_ref[s:s + 1, :]

    # LayerNorm over the real feature dim (no padding lanes -> no mask).
    inv_d = 1.0 / emb.shape[-1]
    mean     = jnp.sum(emb, axis=-1, keepdims=True) * inv_d
    centered = emb - mean
    var      = jnp.sum(centered * centered, axis=-1, keepdims=True) * inv_d
    out_ref[...] = centered * lax.rsqrt(var + LN_EPS) * gamma_ref[...] + beta_ref[...]


def bert_embedding(input_ids, segment_ids, tok_tbl, pos_tbl, seg_tbl, gamma, beta):
    B, S = input_ids.shape
    V, D = tok_tbl.shape
    if S > pos_tbl.shape[0]:
        raise ValueError(f"seq_len {S} exceeds maxlen {pos_tbl.shape[0]}")

    ids3  = input_ids.reshape(B, S, 1).astype(jnp.int32)
    segs3 = segment_ids.reshape(B, S, 1).astype(jnp.int32)
    pos_s = pos_tbl[:S].astype(jnp.float32)                       # (S, D), shared by all batches
    tok_f = tok_tbl.astype(jnp.float32)
    seg_f = seg_tbl.astype(jnp.float32)
    g2    = gamma.reshape(1, D).astype(jnp.float32)
    b2    = beta.reshape(1, D).astype(jnp.float32)

    # TODO(synk): for real BERT sizes (vocab ~30k, D=768, long S) keep the token
    # table in HBM (BlockSpec(memory_space=pl.ANY)) with a scalar-prefetched DMA
    # row gather, and tile the sequence dim as well; the VMEM-resident weighted
    # sum used here only makes sense for this 4-word toy vocabulary.
    out = pl.pallas_call(
        _embedding_kernel,
        out_shape=jax.ShapeDtypeStruct((B, S, D), jnp.float32),
        grid=(B,),
        in_specs=[
            pl.BlockSpec((None, S, 1), lambda b: (b, 0, 0)),      # token ids, per batch
            pl.BlockSpec((None, S, 1), lambda b: (b, 0, 0)),      # segment ids, per batch
            pl.BlockSpec((S, D),       lambda b: (0, 0)),         # pos rows, reused every batch
            pl.BlockSpec((V, D),       lambda b: (0, 0)),         # token table
            pl.BlockSpec((seg_f.shape[0], D), lambda b: (0, 0)),  # segment table
            pl.BlockSpec((1, D),       lambda b: (0, 0)),         # LayerNorm gamma
            pl.BlockSpec((1, D),       lambda b: (0, 0)),         # LayerNorm beta
        ],
        out_specs=pl.BlockSpec((None, S, D), lambda b: (b, 0, 0)),
        compiler_params=pltpu.CompilerParams(
            dimension_semantics=("parallel",)),                   # 2 TCs on v7x
    )(ids3, segs3, pos_s, tok_f, seg_f, g2, b2)

    return out


def _reference(input_ids, segment_ids, tok_tbl, pos_tbl, seg_tbl, gamma, beta):
    S = input_ids.shape[1]
    emb = tok_tbl[input_ids] + pos_tbl[jnp.arange(S)][None, :, :] + seg_tbl[segment_ids]
    mean = jnp.mean(emb, axis=-1, keepdims=True)
    var  = jnp.mean((emb - mean) ** 2, axis=-1, keepdims=True)
    return (emb - mean) * lax.rsqrt(var + LN_EPS) * gamma + beta


if __name__ == "__main__":
    key = jax.random.PRNGKey(0)
    k_ids, k_seg, k_tok, k_pos, k_segt, k_g, k_b = jax.random.split(key, 7)

    B, S = 2, 8
    input_ids   = jax.random.randint(k_ids, (B, S), 0, VOCAB_SIZE, dtype=jnp.int32)
    segment_ids = jax.random.randint(k_seg, (B, S), 0, N_SEGMENTS, dtype=jnp.int32)

    # Deterministic synthetic parameters (nn.Embedding ~ N(0,1); LayerNorm affine
    # perturbed away from ones/zeros so the gamma/beta path is actually exercised).
    tok_tbl = jax.random.normal(k_tok,  (VOCAB_SIZE, D_MODEL), jnp.float32)
    pos_tbl = jax.random.normal(k_pos,  (MAXLEN, D_MODEL),     jnp.float32)
    seg_tbl = jax.random.normal(k_segt, (N_SEGMENTS, D_MODEL), jnp.float32)
    gamma   = 1.0 + 0.1 * jax.random.normal(k_g, (D_MODEL,), jnp.float32)
    beta    = 0.1 * jax.random.normal(k_b, (D_MODEL,), jnp.float32)

    out = bert_embedding(input_ids, segment_ids, tok_tbl, pos_tbl, seg_tbl, gamma, beta)
    out = jax.block_until_ready(out)

    ref = _reference(input_ids, segment_ids, tok_tbl, pos_tbl, seg_tbl, gamma, beta)
    assert out.shape == (B, S, D_MODEL)
    err = float(jnp.max(jnp.abs(out - ref)))
    assert jnp.allclose(out, ref, atol=1e-4, rtol=1e-4), f"max abs err = {err}"

    print("KERNEL_OK")
</pallas_src>

<mosaic_0001>
module attributes {stable_mosaic.version = 11 : i64} {
  func.func @_embedding_kernel(%arg0: i32, %arg1: memref<1x8x1xi32, #tpu.memory_space<vmem>>, %arg2: memref<1x8x1xi32, #tpu.memory_space<vmem>>, %arg3: memref<8x32xf32, #tpu.memory_space<vmem>>, %arg4: memref<4x32xf32, #tpu.memory_space<vmem>>, %arg5: memref<2x32xf32, #tpu.memory_space<vmem>>, %arg6: memref<1x32xf32, #tpu.memory_space<vmem>>, %arg7: memref<1x32xf32, #tpu.memory_space<vmem>>, %arg8: memref<1x8x32xf32, #tpu.memory_space<vmem>>) attributes {dimension_semantics = [#tpu.dimension_semantics<parallel>], iteration_bounds = array<i64: 2>, scalar_prefetch = 0 : i64, scratch_operands = 0 : i64, tpu.core_type = #tpu.core_type<tc>, window_params = [{transform_indices = @transform_0, window_bounds = array<i64: 1, 8, 1>}, {transform_indices = @transform_1, window_bounds = array<i64: 1, 8, 1>}, {pipeline_mode = #tpu.pipeline_mode<synchronous>, transform_indices = @transform_2, window_bounds = array<i64: 8, 32>}, {pipeline_mode = #tpu.pipeline_mode<synchronous>, transform_indices = @transform_3, window_bounds = array<i64: 4, 32>}, {pipeline_mode = #tpu.pipeline_mode<synchronous>, transform_indices = @transform_4, window_bounds = array<i64: 2, 32>}, {pipeline_mode = #tpu.pipeline_mode<synchronous>, transform_indices = @transform_5, window_bounds = array<i64: 1, 32>}, {pipeline_mode = #tpu.pipeline_mode<synchronous>, transform_indices = @transform_6, window_bounds = array<i64: 1, 32>}, {transform_indices = @transform_7, window_bounds = array<i64: 1, 8, 32>}]} {
    %c0 = arith.constant 0 : index
    %c0_0 = arith.constant 0 : index
    %c0_1 = arith.constant 0 : index
    %0 = vector.load %arg1[%c0, %c0_0, %c0_1] : memref<1x8x1xi32, #tpu.memory_space<vmem>>, vector<1x8x1xi32>
    %1 = vector.shape_cast %0 : vector<1x8x1xi32> to vector<8x1xi32>
    %c0_2 = arith.constant 0 : index
    %c0_3 = arith.constant 0 : index
    %c0_4 = arith.constant 0 : index
    %2 = vector.load %arg2[%c0_2, %c0_3, %c0_4] : memref<1x8x1xi32, #tpu.memory_space<vmem>>, vector<1x8x1xi32>
    %3 = vector.shape_cast %2 : vector<1x8x1xi32> to vector<8x1xi32>
    %c0_5 = arith.constant 0 : index
    %c0_6 = arith.constant 0 : index
    %4 = vector.load %arg3[%c0_5, %c0_6] : memref<8x32xf32, #tpu.memory_space<vmem>>, vector<8x32xf32>
    %c0_i32 = arith.constant 0 : i32
    %5 = vector.broadcast %c0_i32 : i32 to vector<8x1xi32>
    %6 = arith.cmpi eq, %1, %5 : vector<8x1xi32>
    %7 = arith.extui %6 : vector<8x1xi1> to vector<8x1xi32>
    %8 = arith.sitofp %7 : vector<8x1xi32> to vector<8x1xf32>
    %c0_7 = arith.constant 0 : index
    %c0_8 = arith.constant 0 : index
    %9 = vector.load %arg4[%c0_7, %c0_8] : memref<4x32xf32, #tpu.memory_space<vmem>>, vector<1x32xf32>
    %10 = vector.broadcast %8 : vector<8x1xf32> to vector<8x32xf32>
    %11 = vector.broadcast %9 : vector<1x32xf32> to vector<8x32xf32>
    %12 = arith.mulf %10, %11 : vector<8x32xf32>
    %13 = arith.addf %4, %12 : vector<8x32xf32>
    %c1_i32 = arith.constant 1 : i32
    %14 = vector.broadcast %c1_i32 : i32 to vector<8x1xi32>
    %15 = arith.cmpi eq, %1, %14 : vector<8x1xi32>
    %16 = arith.extui %15 : vector<8x1xi1> to vector<8x1xi32>
    %17 = arith.sitofp %16 : vector<8x1xi32> to vector<8x1xf32>
    %c1 = arith.constant 1 : index
    %c0_9 = arith.constant 0 : index
    %18 = vector.load %arg4[%c1, %c0_9] : memref<4x32xf32, #tpu.memory_space<vmem>>, vector<1x32xf32>
    %19 = vector.broadcast %17 : vector<8x1xf32> to vector<8x32xf32>
    %20 = vector.broadcast %18 : vector<1x32xf32> to vector<8x32xf32>
    %21 = arith.mulf %19, %20 : vector<8x32xf32>
    %22 = arith.addf %13, %21 : vector<8x32xf32>
    %c2_i32 = arith.constant 2 : i32
    %23 = vector.broadcast %c2_i32 : i32 to vector<8x1xi32>
    %24 = arith.cmpi eq, %1, %23 : vector<8x1xi32>
    %25 = arith.extui %24 : vector<8x1xi1> to vector<8x1xi32>
    %26 = arith.sitofp %25 : vector<8x1xi32> to vector<8x1xf32>
    %c2 = arith.constant 2 : index
    %c0_10 = arith.constant 0 : index
    %27 = vector.load %arg4[%c2, %c0_10] : memref<4x32xf32, #tpu.memory_space<vmem>>, vector<1x32xf32>
    %28 = vector.broadcast %26 : vector<8x1xf32> to vector<8x32xf32>
    %29 = vector.broadcast %27 : vector<1x32xf32> to vector<8x32xf32>
    %30 = arith.mulf %28, %29 : vector<8x32xf32>
    %31 = arith.addf %22, %30 : vector<8x32xf32>
    %c3_i32 = arith.constant 3 : i32
    %32 = vector.broadcast %c3_i32 : i32 to vector<8x1xi32>
    %33 = arith.cmpi eq, %1, %32 : vector<8x1xi32>
    %34 = arith.extui %33 : vector<8x1xi1> to vector<8x1xi32>
    %35 = arith.sitofp %34 : vector<8x1xi32> to vector<8x1xf32>
    %c3 = arith.constant 3 : index
    %c0_11 = arith.constant 0 : index
    %36 = vector.load %arg4[%c3, %c0_11] : memref<4x32xf32, #tpu.memory_space<vmem>>, vector<1x32xf32>
    %37 = vector.broadcast %35 : vector<8x1xf32> to vector<8x32xf32>
    %38 = vector.broadcast %36 : vector<1x32xf32> to vector<8x32xf32>
    %39 = arith.mulf %37, %38 : vector<8x32xf32>
    %40 = arith.addf %31, %39 : vector<8x32xf32>
    %c0_i32_12 = arith.constant 0 : i32
    %41 = vector.broadcast %c0_i32_12 : i32 to vector<8x1xi32>
    %42 = arith.cmpi eq, %3, %41 : vector<8x1xi32>
    %43 = arith.extui %42 : vector<8x1xi1> to vector<8x1xi32>
    %44 = arith.sitofp %43 : vector<8x1xi32> to vector<8x1xf32>
    %c0_13 = arith.constant 0 : index
    %c0_14 = arith.constant 0 : index
    %45 = vector.load %arg5[%c0_13, %c0_14] : memref<2x32xf32, #tpu.memory_space<vmem>>, vector<1x32xf32>
    %46 = vector.broadcast %44 : vector<8x1xf32> to vector<8x32xf32>
    %47 = vector.broadcast %45 : vector<1x32xf32> to vector<8x32xf32>
    %48 = arith.mulf %46, %47 : vector<8x32xf32>
    %49 = arith.addf %40, %48 : vector<8x32xf32>
    %c1_i32_15 = arith.constant 1 : i32
    %50 = vector.broadcast %c1_i32_15 : i32 to vector<8x1xi32>
    %51 = arith.cmpi eq, %3, %50 : vector<8x1xi32>
    %52 = arith.extui %51 : vector<8x1xi1> to vector<8x1xi32>
    %53 = arith.sitofp %52 : vector<8x1xi32> to vector<8x1xf32>
    %c1_16 = arith.constant 1 : index
    %c0_17 = arith.constant 0 : index
    %54 = vector.load %arg5[%c1_16, %c0_17] : memref<2x32xf32, #tpu.memory_space<vmem>>, vector<1x32xf32>
    %55 = vector.broadcast %53 : vector<8x1xf32> to vector<8x32xf32>
    %56 = vector.broadcast %54 : vector<1x32xf32> to vector<8x32xf32>
    %57 = arith.mulf %55, %56 : vector<8x32xf32>
    %58 = arith.addf %49, %57 : vector<8x32xf32>
    %cst = arith.constant dense<0.000000e+00> : vector<8xf32>
    %59 = vector.multi_reduction <add>, %58, %cst [1] : vector<8x32xf32> to vector<8xf32>
    %60 = vector.shape_cast %59 : vector<8xf32> to vector<8x1xf32>
    %cst_18 = arith.constant 3.125000e-02 : f32
    %61 = vector.broadcast %cst_18 : f32 to vector<8x1xf32>
    %62 = arith.mulf %60, %61 : vector<8x1xf32>
    %63 = vector.broadcast %62 : vector<8x1xf32> to vector<8x32xf32>
    %64 = arith.subf %58, %63 : vector<8x32xf32>
    %65 = arith.mulf %64, %64 : vector<8x32xf32>
    %cst_19 = arith.constant dense<0.000000e+00> : vector<8xf32>
    %66 = vector.multi_reduction <add>, %65, %cst_19 [1] : vector<8x32xf32> to vector<8xf32>
    %67 = vector.shape_cast %66 : vector<8xf32> to vector<8x1xf32>
    %cst_20 = arith.constant 3.125000e-02 : f32
    %68 = vector.broadcast %cst_20 : f32 to vector<8x1xf32>
    %69 = arith.mulf %67, %68 : vector<8x1xf32>
    %cst_21 = arith.constant 9.99999974E-6 : f32
    %70 = vector.broadcast %cst_21 : f32 to vector<8x1xf32>
    %71 = arith.addf %69, %70 : vector<8x1xf32>
    %72 = math.rsqrt %71 : vector<8x1xf32>
    %73 = vector.broadcast %72 : vector<8x1xf32> to vector<8x32xf32>
    %74 = arith.mulf %64, %73 : vector<8x32xf32>
    %c0_22 = arith.constant 0 : index
    %c0_23 = arith.constant 0 : index
    %75 = vector.load %arg6[%c0_22, %c0_23] : memref<1x32xf32, #tpu.memory_space<vmem>>, vector<1x32xf32>
    %76 = vector.broadcast %75 : vector<1x32xf32> to vector<8x32xf32>
    %77 = arith.mulf %74, %76 : vector<8x32xf32>
    %c0_24 = arith.constant 0 : index
    %c0_25 = arith.constant 0 : index
    %78 = vector.load %arg7[%c0_24, %c0_25] : memref<1x32xf32, #tpu.memory_space<vmem>>, vector<1x32xf32>
    %79 = vector.broadcast %78 : vector<1x32xf32> to vector<8x32xf32>
    %80 = arith.addf %77, %79 : vector<8x32xf32>
    %c0_26 = arith.constant 0 : index
    %c0_27 = arith.constant 0 : index
    %c0_28 = arith.constant 0 : index
    %81 = vector.load %arg8[%c0_26, %c0_27, %c0_28] : memref<1x8x32xf32, #tpu.memory_space<vmem>>, vector<1x8x32xf32>
    %82 = vector.shape_cast %81 : vector<1x8x32xf32> to vector<8x32xf32>
    %83 = vector.shape_cast %80 : vector<8x32xf32> to vector<1x8x32xf32>
    tpu.vector_store %arg8[%c0_26, %c0_27, %c0_28], %83 {strides = array<i32>} : memref<1x8x32xf32, #tpu.memory_space<vmem>>, vector<1x8x32xf32>,
    return
  }
  func.func @transform_0(%arg0: i32) -> (i32, i32, i32) {
    %c0_i32 = arith.constant 0 : i32
    %c0_i32_0 = arith.constant 0 : i32
    %c0_i32_1 = arith.constant 0 : i32
    return %arg0, %c0_i32, %c0_i32_0 : i32, i32, i32
  }
  func.func @transform_1(%arg0: i32) -> (i32, i32, i32) {
    %c0_i32 = arith.constant 0 : i32
    %c0_i32_0 = arith.constant 0 : i32
    %c0_i32_1 = arith.constant 0 : i32
    return %arg0, %c0_i32, %c0_i32_0 : i32, i32, i32
  }
  func.func @transform_2(%arg0: i32) -> (i32, i32) {
    %c0_i32 = arith.constant 0 : i32
    %c0_i32_0 = arith.constant 0 : i32
    %c0_i32_1 = arith.constant 0 : i32
    return %c0_i32, %c0_i32_0 : i32, i32
  }
  func.func @transform_3(%arg0: i32) -> (i32, i32) {
    %c0_i32 = arith.constant 0 : i32
    %c0_i32_0 = arith.constant 0 : i32
    %c0_i32_1 = arith.constant 0 : i32
    return %c0_i32, %c0_i32_0 : i32, i32
  }
  func.func @transform_4(%arg0: i32) -> (i32, i32) {
    %c0_i32 = arith.constant 0 : i32
    %c0_i32_0 = arith.constant 0 : i32
    %c0_i32_1 = arith.constant 0 : i32
    return %c0_i32, %c0_i32_0 : i32, i32
  }
  func.func @transform_5(%arg0: i32) -> (i32, i32) {
    %c0_i32 = arith.constant 0 : i32
    %c0_i32_0 = arith.constant 0 : i32
    %c0_i32_1 = arith.constant 0 : i32
    return %c0_i32, %c0_i32_0 : i32, i32
  }
  func.func @transform_6(%arg0: i32) -> (i32, i32) {
    %c0_i32 = arith.constant 0 : i32
    %c0_i32_0 = arith.constant 0 : i32
    %c0_i32_1 = arith.constant 0 : i32
    return %c0_i32, %c0_i32_0 : i32, i32
  }
  func.func @transform_7(%arg0: i32) -> (i32, i32, i32) {
    %c0_i32 = arith.constant 0 : i32
    %c0_i32_0 = arith.constant 0 : i32
    %c0_i32_1 = arith.constant 0 : i32
    return %arg0, %c0_i32, %c0_i32_0 : i32, i32, i32
  }
}

</mosaic_0001>

<llo_original>
// kernel: tpu_custom_call.1
$region0: #{tpu_custom_call.1}
  #allocation0 [shape = 'u32[]', space=smem, size = 0x4, offset = 0x4, fixed_abs, tag = 'smem constant byte address 0x4 - core index']
  #allocation1 [shape = 'u32[144,128]{1,0:T(1,128)}', space=vmem, size = 0x12000, scoped, tag = 'internal scratch']
  %s0 = inlined_call_operand.vmem [shape: s32[2,8,1], index: 0, kind: input, shape index: {}]
  %s1 = inlined_call_operand.vmem [shape: s32[2,8,1], index: 1, kind: input, shape index: {}]
  %s2 = inlined_call_operand.vmem [shape: f32[8,32], index: 2, kind: input, shape index: {}]
  %s3 = inlined_call_operand.vmem [shape: f32[4,32], index: 3, kind: input, shape index: {}]
  %s4 = inlined_call_operand.vmem [shape: f32[2,32], index: 4, kind: input, shape index: {}]
  %s5 = inlined_call_operand.vmem [shape: f32[1,32], index: 5, kind: input, shape index: {}]
  %s6 = inlined_call_operand.vmem [shape: f32[1,32], index: 6, kind: input, shape index: {}]
  %s7 = inlined_call_operand.hbm [shape: f32[2,8,32], index: 7, kind: output, shape index: {}]
  %s8 = sld [smem:[#allocation0]]
  $region61: #{tpu_custom_call.1} parent=0
    _
  %s10 = ssub.s32 1, %s8
  %s11 = scalar_select 0, %s10, %s8
  $region1: #{tpu_custom_call.1} parent=0
    #allocation2 [shape = 'u8[8192]{0}', space=vmem, size = 0x2000, scoped, tag = 'output window, operand 0']
    #allocation3 [shape = 's32[2]{0}', space=sflag, size = 0x8, scoped, tag = 'scoped memory for tpu_custom_call.1']
    %12 = vsyncpa [#allocation3], 0
    %s13 = scalar_lea.sflag [#allocation3], 1
    %14 = vsyncpa %s13, 0
    loop: start=0, step=1, limit=4
    $region2: #{tpu_custom_call.1} parent=1 // loop_pre_header
      _
    $region3: #{tpu_custom_call.1} parent=1 // loop_header
      %s16 = sphi 0, %s20
      %p17 = scmp.ge.s32.totalorder %s16, 4
      %s26 = sphi 0, %s28
      %s29 = sphi 0, %s26
      %s30 = sphi 0, %s29
      %s46 = sphi 0, %s30
      %s52 = sphi 0, %s54
      %s55 = sphi 0, %s52
      %s56 = sphi 0, %s55
      %s72 = sphi 0, %s56
      %s76 = sphi 0, %s76
      %s78 = sphi 0, %s76
      %s79 = sphi 0, %s78
      %s93 = sphi 0, %s79
      %s97 = sphi 0, %s97
      %s99 = sphi 0, %s97
      %s100 = sphi 0, %s99
      %s114 = sphi 0, %s100
      %s118 = sphi 0, %s118
      %s120 = sphi 0, %s118
      %s121 = sphi 0, %s120
      %s135 = sphi 0, %s121
      %s139 = sphi 0, %s139
      %s141 = sphi 0, %s139
      %s142 = sphi 0, %s141
      %s156 = sphi 0, %s142
      %s160 = sphi 0, %s160
      %s162 = sphi 0, %s160
      %s163 = sphi 0, %s162
      %s177 = sphi 0, %s163
      %s183 = sphi 0, %s185
      %s186 = sphi 0, %s183
      %s187 = sphi 0, %s186
      %s203 = sphi 0, %s187
    $region4: #{tpu_custom_call.1} parent=1 // loop_header_branch
      %19 = sbr.rel (%p17) target = $region8
    $region5: #{tpu_custom_call.1} parent=1 // loop_body
      %s21 = ssub.s32 %s16, 1
      %s22 = ssub.s32 %s16, 2
      %s23 = sadd.s32 %s16, 1
      %s24 = ssub.s32 %s16, %s23
      %p25 = scmp.eq.s32.totalorder %s24, 0
      %s27 = sadd.s32 %s26, 1
      %s28 = scalar_select %p25, %s26, %s27
      %p31 = pneg %p25
      %p32 = scmp.eq.s32.totalorder %s16, 1
      %p33 = por %p31, %p32
      %p34 = scmp.ne.s32.totalorder %s26, %s29
      %p35 = scmp.eq.s32.totalorder %s16, 0
      %p36 = por %p34, %p35
      %p37 = scmp.ne.s32.totalorder %s26, %s29
      %p38 = scmp.eq.s32.totalorder %s21, 1
      %p39 = por %p37, %p38
      %p40 = scmp.ne.s32.totalorder %s29, %s30
      %p41 = scmp.eq.s32.totalorder %s21, 0
      %p42 = por %p40, %p41
      %p43 = scmp.ne.s32.totalorder %s29, %s30
      %p44 = scmp.eq.s32.totalorder %s22, 1
      %p45 = por %p43, %p44
      %p47 = scmp.ne.s32.totalorder %s30, %s46
      %p48 = scmp.eq.s32.totalorder %s22, 0
      %p49 = por %p47, %p48
      %s50 = ssub.s32 %s16, %s23
      %p51 = scmp.eq.s32.totalorder %s50, 0
      %s53 = sadd.s32 %s52, 1
      %s54 = scalar_select %p51, %s52, %s53
      %p57 = pneg %p51
      %p58 = scmp.eq.s32.totalorder %s16, 1
      %p59 = por %p57, %p58
      %p60 = scmp.ne.s32.totalorder %s52, %s55
      %p61 = scmp.eq.s32.totalorder %s16, 0
      %p62 = por %p60, %p61
      %p63 = scmp.ne.s32.totalorder %s52, %s55
      %p64 = scmp.eq.s32.totalorder %s21, 1
      %p65 = por %p63, %p64
      %p66 = scmp.ne.s32.totalorder %s55, %s56
      %p67 = scmp.eq.s32.totalorder %s21, 0
      %p68 = por %p66, %p67
      %p69 = scmp.ne.s32.totalorder %s55, %s56
      %p70 = scmp.eq.s32.totalorder %s22, 1
      %p71 = por %p69, %p70
      %p73 = scmp.ne.s32.totalorder %s56, %s72
      %p74 = scmp.eq.s32.totalorder %s22, 0
      %p75 = por %p73, %p74
      %s77 = sadd.s32 %s76, 1
      %p80 = scmp.eq.s32.totalorder %s16, 1
      %p81 = scmp.ne.s32.totalorder %s76, %s78
      %p82 = scmp.eq.s32.totalorder %s16, 0
      %p83 = por %p81, %p82
      %p84 = scmp.ne.s32.totalorder %s76, %s78
      %p85 = scmp.eq.s32.totalorder %s21, 1
      %p86 = por %p84, %p85
      %p87 = scmp.ne.s32.totalorder %s78, %s79
      %p88 = scmp.eq.s32.totalorder %s21, 0
      %p89 = por %p87, %p88
      %p90 = scmp.ne.s32.totalorder %s78, %s79
      %p91 = scmp.eq.s32.totalorder %s22, 1
      %p92 = por %p90, %p91
      %p94 = scmp.ne.s32.totalorder %s79, %s93
      %p95 = scmp.eq.s32.totalorder %s22, 0
      %p96 = por %p94, %p95
      %s98 = sadd.s32 %s97, 1
      %p101 = scmp.eq.s32.totalorder %s16, 1
      %p102 = scmp.ne.s32.totalorder %s97, %s99
      %p103 = scmp.eq.s32.totalorder %s16, 0
      %p104 = por %p102, %p103
      %p105 = scmp.ne.s32.totalorder %s97, %s99
      %p106 = scmp.eq.s32.totalorder %s21, 1
      %p107 = por %p105, %p106
      %p108 = scmp.ne.s32.totalorder %s99, %s100
      %p109 = scmp.eq.s32.totalorder %s21, 0
      %p110 = por %p108, %p109
      %p111 = scmp.ne.s32.totalorder %s99, %s100
      %p112 = scmp.eq.s32.totalorder %s22, 1
      %p113 = por %p111, %p112
      %p115 = scmp.ne.s32.totalorder %s100, %s114
      %p116 = scmp.eq.s32.totalorder %s22, 0
      %p117 = por %p115, %p116
      %s119 = sadd.s32 %s118, 1
      %p122 = scmp.eq.s32.totalorder %s16, 1
      %p123 = scmp.ne.s32.totalorder %s118, %s120
      %p124 = scmp.eq.s32.totalorder %s16, 0
      %p125 = por %p123, %p124
      %p126 = scmp.ne.s32.totalorder %s118, %s120
      %p127 = scmp.eq.s32.totalorder %s21, 1
      %p128 = por %p126, %p127
      %p129 = scmp.ne.s32.totalorder %s120, %s121
      %p130 = scmp.eq.s32.totalorder %s21, 0
      %p131 = por %p129, %p130
      %p132 = scmp.ne.s32.totalorder %s120, %s121
      %p133 = scmp.eq.s32.totalorder %s22, 1
      %p134 = por %p132, %p133
      %p136 = scmp.ne.s32.totalorder %s121, %s135
      %p137 = scmp.eq.s32.totalorder %s22, 0
      %p138 = por %p136, %p137
      %s140 = sadd.s32 %s139, 1
      %p143 = scmp.eq.s32.totalorder %s16, 1
      %p144 = scmp.ne.s32.totalorder %s139, %s141
      %p145 = scmp.eq.s32.totalorder %s16, 0
      %p146 = por %p144, %p145
      %p147 = scmp.ne.s32.totalorder %s139, %s141
      %p148 = scmp.eq.s32.totalorder %s21, 1
      %p149 = por %p147, %p148
      %p150 = scmp.ne.s32.totalorder %s141, %s142
      %p151 = scmp.eq.s32.totalorder %s21, 0
      %p152 = por %p150, %p151
      %p153 = scmp.ne.s32.totalorder %s141, %s142
      %p154 = scmp.eq.s32.totalorder %s22, 1
      %p155 = por %p153, %p154
      %p157 = scmp.ne.s32.totalorder %s142, %s156
      %p158 = scmp.eq.s32.totalorder %s22, 0
      %p159 = por %p157, %p158
      %s161 = sadd.s32 %s160, 1
      %p164 = scmp.eq.s32.totalorder %s16, 1
      %p165 = scmp.ne.s32.totalorder %s160, %s162
      %p166 = scmp.eq.s32.totalorder %s16, 0
      %p167 = por %p165, %p166
      %p168 = scmp.ne.s32.totalorder %s160, %s162
      %p169 = scmp.eq.s32.totalorder %s21, 1
      %p170 = por %p168, %p169
      %p171 = scmp.ne.s32.totalorder %s162, %s163
      %p172 = scmp.eq.s32.totalorder %s21, 0
      %p173 = por %p171, %p172
      %p174 = scmp.ne.s32.totalorder %s162, %s163
      %p175 = scmp.eq.s32.totalorder %s22, 1
      %p176 = por %p174, %p175
      %p178 = scmp.ne.s32.totalorder %s163, %s177
      %p179 = scmp.eq.s32.totalorder %s22, 0
      %p180 = por %p178, %p179
      %s181 = ssub.s32 %s16, %s23
      %p182 = scmp.eq.s32.totalorder %s181, 0
      %s184 = sadd.s32 %s183, 1
      %s185 = scalar_select %p182, %s183, %s184
      %p188 = pneg %p182
      %p189 = scmp.eq.s32.totalorder %s16, 1
      %p190 = por %p188, %p189
      %p191 = scmp.ne.s32.totalorder %s183, %s186
      %p192 = scmp.eq.s32.totalorder %s16, 0
      %p193 = por %p191, %p192
      %p194 = scmp.ne.s32.totalorder %s183, %s186
      %p195 = scmp.eq.s32.totalorder %s21, 1
      %p196 = por %p194, %p195
      %p197 = scmp.ne.s32.totalorder %s186, %s187
      %p198 = scmp.eq.s32.totalorder %s21, 0
      %p199 = por %p197, %p198
      %p200 = scmp.ne.s32.totalorder %s186, %s187
      %p201 = scmp.eq.s32.totalorder %s22, 1
      %p202 = por %p200, %p201
      %p204 = scmp.ne.s32.totalorder %s187, %s203
      %p205 = scmp.eq.s32.totalorder %s22, 0
      %p206 = por %p204, %p205
      %p207 = scmp.le.s32.totalorder 1, %s16
      %p208 = scmp.lt.s32.totalorder %s16, 3
      %p209 = pnand %p207, %p208
      %p210 = pneg %p209
      // Predicated region
      $region9: #{tpu_custom_call.1} parent=5 // pred_check
        _
      $region10: #{tpu_custom_call.1} parent=5 // pred_check_branch
        %212 = sbr.rel (%p209) target = $region12
      $region11: #{tpu_custom_call.1} parent=5 // pred_region
        %s213 = ssub.s32 %s16, 1
        // Predicated region
        $region13: #{tpu_custom_call.1} parent=11 // pred_check
          %p214 = pneg %p89
        $region14: #{tpu_custom_call.1} parent=11 // pred_check_branch
          %216 = sbr.rel (%p214) target = $region16
        $region15: #{tpu_custom_call.1} parent=11 // pred_region
          _
        $region16: #{tpu_custom_call.1} parent=11 // pred_fallthru
          _
        // Predicated region
        $region17: #{tpu_custom_call.1} parent=11 // pred_check
          %p217 = pneg %p110
        $region18: #{tpu_custom_call.1} parent=11 // pred_check_branch
          %219 = sbr.rel (%p217) target = $region20
        $region19: #{tpu_custom_call.1} parent=11 // pred_region
          _
        $region20: #{tpu_custom_call.1} parent=11 // pred_fallthru
          _
        // Predicated region
        $region21: #{tpu_custom_call.1} parent=11 // pred_check
          %p220 = pneg %p131
        $region22: #{tpu_custom_call.1} parent=11 // pred_check_branch
          %222 = sbr.rel (%p220) target = $region24
        $region23: #{tpu_custom_call.1} parent=11 // pred_region
          _
        $region24: #{tpu_custom_call.1} parent=11 // pred_fallthru
          _
        // Predicated region
        $region25: #{tpu_custom_call.1} parent=11 // pred_check
          %p223 = pneg %p152
        $region26: #{tpu_custom_call.1} parent=11 // pred_check_branch
          %225 = sbr.rel (%p223) target = $region28
        $region27: #{tpu_custom_call.1} parent=11 // pred_region
          _
        $region28: #{tpu_custom_call.1} parent=11 // pred_fallthru
          _
        // Predicated region
        $region29: #{tpu_custom_call.1} parent=11 // pred_check
          %p226 = pneg %p173
        $region30: #{tpu_custom_call.1} parent=11 // pred_check_branch
          %228 = sbr.rel (%p226) target = $region32
        $region31: #{tpu_custom_call.1} parent=11 // pred_region
          _
        $region32: #{tpu_custom_call.1} parent=11 // pred_fallthru
          _
      $region12: #{tpu_custom_call.1} parent=5 // pred_fallthru
        _
      %p229 = scmp.lt.s32.totalorder %s16, 2
      // Predicated region
      $region33: #{tpu_custom_call.1} parent=5 // pred_check
        %p230 = pneg %p229
      $region34: #{tpu_custom_call.1} parent=5 // pred_check_branch
        %232 = sbr.rel (%p230) target = $region36
      $region35: #{tpu_custom_call.1} parent=5 // pred_region
        // Predicated region
        $region37: #{tpu_custom_call.1} parent=35 // pred_check
          %p233 = pneg %p36
        $region38: #{tpu_custom_call.1} parent=35 // pred_check_branch
          %235 = sbr.rel (%p233) target = $region40
        $region39: #{tpu_custom_call.1} parent=35 // pred_region
          %p236 = scmp.lt.s32.totalorder %s16, 1
          %s237 = scalar_select %p236, %s16, 1
          %s238 = smul.addr %s237, 8
          %s239 = scalar_lea.vmem %s0, %s238
        $region40: #{tpu_custom_call.1} parent=35 // pred_fallthru
          _
        // Predicated region
        $region41: #{tpu_custom_call.1} parent=35 // pred_check
          %p240 = pneg %p62
        $region42: #{tpu_custom_call.1} parent=35 // pred_check_branch
          %242 = sbr.rel (%p240) target = $region44
        $region43: #{tpu_custom_call.1} parent=35 // pred_region
          %p243 = scmp.lt.s32.totalorder %s16, 1
          %s244 = scalar_select %p243, %s16, 1
          %s245 = smul.addr %s244, 8
          %s246 = scalar_lea.vmem %s1, %s245
        $region44: #{tpu_custom_call.1} parent=35 // pred_fallthru
          _
      $region36: #{tpu_custom_call.1} parent=5 // pred_fallthru
        _
      %p247 = scmp.le.s32.totalorder 1, %s16
      %p248 = scmp.lt.s32.totalorder %s16, 3
      %p249 = pnand %p247, %p248
      %p250 = pneg %p249
      // Predicated region
      $region45: #{tpu_custom_call.1} parent=5 // pred_check
        _
      $region46: #{tpu_custom_call.1} parent=5 // pred_check_branch
        %252 = sbr.rel (%p249) target = $region48
      $region47: #{tpu_custom_call.1} parent=5 // pred_region
        %s253 = ssub.s32 %s16, 1
        %p254 = scmp.lt.s32.totalorder %s21, 1
        %s255 = scalar_select %p254, %s21, 1
        %s256 = smul.addr %s255, 8
        %s257 = scalar_lea.vmem %s0, %s256
        %p258 = pneg %p42
        %p259 = pneg %p39
        %p260 = scmp.lt.s32.totalorder %s21, 1
        %s261 = scalar_select %p260, %s21, 1
        %s262 = smul.addr %s261, 8
        %s263 = scalar_lea.vmem %s1, %s262
        %p264 = pneg %p68
        %p265 = pneg %p65
        %p266 = pneg %p89
        %p267 = pneg %p86
        %p268 = pneg %p110
        %p269 = pneg %p107
        %p270 = pneg %p131
        %p271 = pneg %p128
        %p272 = pneg %p152
        %p273 = pneg %p149
        %p274 = pneg %p173
        %p275 = pneg %p170
        %p276 = pneg %p199
        %p277 = pneg %p196
        %s278 = sand.u32 %s186, 1
        %s279 = scalar_lea.sflag [#allocation3], %s278
        %s280 = sand.u32 %s186, 1
        %s281 = smul.addr %s280, 8
        %s282 = scalar_lea.vmem [#allocation2], %s281
        %p283 = scmp.lt.s32.totalorder %s21, 1
        %s284 = scalar_select %p283, %s21, 1
        %s285 = smul.addr %s284, 8
        %s286 = scalar_lea.vmem %s0, %s285
        %p287 = scmp.lt.s32.totalorder %s21, 1
        %s288 = scalar_select %p287, %s21, 1
        %s289 = smul.addr %s288, 8
        %s290 = scalar_lea.vmem %s1, %s289
        %v291 = vld [vmem:[%s286] sm:$0xff]
        %v292 = vld [vmem:[%s290] sm:$0xff]
        %v293 = vld [vmem:[%s2] sm:$0xff]
        %vm294 = vcmp.eq.s32.totalorder %v291, 0
        %v295 = vsel %vm294, 1, 0
        %v296 = vcvt.s32.f32 %v295
        %v297 = vld [vmem:[%s3] sm:$0x1]
        %299 = vset.pattern.permute.xlu0 0
        %300 = vperm.xlu0 %299, %v296
        %v301 = vpop.permute.xlu0 %300
        %v303 = vlaneseq
        %v304 = vshrl.u32 %v303, 7
        %v305 = vsub.s32 0, %v304
        %v306 = vrot.slane %v297, %v305
        %v307 = vmul.f32 %v301, %v306
        %v308 = vadd.f32 %v293, %v307
        %vm309 = vcmp.eq.s32.totalorder %v291, 1
        %v310 = vsel %vm309, 1, 0
        %v311 = vcvt.s32.f32 %v310
        %v312 = vld [vmem:[%s3 + $0x1] sm:$0x1]
        %314 = vset.pattern.permute.xlu0 0
        %315 = vperm.xlu0 %314, %v311
        %v316 = vpop.permute.xlu0 %315
        %v318 = vlaneseq
        %v319 = vshrl.u32 %v318, 7
        %v320 = vsub.s32 0, %v319
        %v321 = vrot.slane %v312, %v320
        %v322 = vmul.f32 %v316, %v321
        %v323 = vadd.f32 %v308, %v322
        %vm324 = vcmp.eq.s32.totalorder %v291, 2
        %v325 = vsel %vm324, 1, 0
        %v326 = vcvt.s32.f32 %v325
        %v327 = vld [vmem:[%s3 + $0x2] sm:$0x1]
        %329 = vset.pattern.permute.xlu0 0
        %330 = vperm.xlu0 %329, %v326
        %v331 = vpop.permute.xlu0 %330
        %v333 = vlaneseq
        %v334 = vshrl.u32 %v333, 7
        %v335 = vsub.s32 0, %v334
        %v336 = vrot.slane %v327, %v335
        %v337 = vmul.f32 %v331, %v336
        %v338 = vadd.f32 %v323, %v337
        %vm339 = vcmp.eq.s32.totalorder %v291, 3
        %v340 = vsel %vm339, 1, 0
        %v341 = vcvt.s32.f32 %v340
        %v342 = vld [vmem:[%s3 + $0x3] sm:$0x1]
        %344 = vset.pattern.permute.xlu0 0
        %345 = vperm.xlu0 %344, %v341
        %v346 = vpop.permute.xlu0 %345
        %v348 = vlaneseq
        %v349 = vshrl.u32 %v348, 7
        %v350 = vsub.s32 0, %v349
        %v351 = vrot.slane %v342, %v350
        %v352 = vmul.f32 %v346, %v351
        %v353 = vadd.f32 %v338, %v352
        %vm354 = vcmp.eq.s32.totalorder %v292, 0
        %v355 = vsel %vm354, 1, 0
        %v356 = vcvt.s32.f32 %v355
        %v357 = vld [vmem:[%s4] sm:$0x1]
        %359 = vset.pattern.permute.xlu0 0
        %360 = vperm.xlu0 %359, %v356
        %v361 = vpop.permute.xlu0 %360
        %v363 = vlaneseq
        %v364 = vshrl.u32 %v363, 7
        %v365 = vsub.s32 0, %v364
        %v366 = vrot.slane %v357, %v365
        %v367 = vmul.f32 %v361, %v366
        %v368 = vadd.f32 %v353, %v367
        %vm369 = vcmp.eq.s32.totalorder %v292, 1
        %v370 = vsel %vm369, 1, 0
        %v371 = vcvt.s32.f32 %v370
        %v372 = vld [vmem:[%s4 + $0x1] sm:$0x1]
        %374 = vset.pattern.permute.xlu0 0
        %375 = vperm.xlu0 %374, %v371
        %v376 = vpop.permute.xlu0 %375
        %v378 = vlaneseq
        %v379 = vshrl.u32 %v378, 7
        %v380 = vsub.s32 0, %v379
        %v381 = vrot.slane %v372, %v380
        %v382 = vmul.f32 %v376, %v381
        %v383 = vadd.f32 %v368, %v382
        %vm384 = vcmask 261120
        %v385 = vsel %vm384, %v383, 0.0
        %386 = vadd.xlane.f32.xlu0 %v385
        %v387 = vpop.xlane.xlu0 %386
        %v388 = vmul.f32 %v387, 0.03125
        %v389 = vsub.f32 %v383, %v388
        %v390 = vmul.f32 %v389, %v389
        %v391 = vsel %vm384, %v390, 0.0
        %392 = vadd.xlane.f32.xlu0 %v391
        %v393 = vpop.xlane.xlu0 %392
        %v394 = vmul.f32 %v393, 0.03125
        %v395 = vadd.f32 %v394, 1e-05
        %v396 = vrsqrt.pop %v395
        %v397 = vmul.f32 %v389, %v396
        %v398 = vld [vmem:[%s5] sm:$0x1]
        %v400 = vlaneseq
        %v401 = vshrl.u32 %v400, 7
        %v402 = vsub.s32 0, %v401
        %v403 = vrot.slane %v398, %v402
        %v405 = vmul.f32 %v397, %v403
        %v406 = vld [vmem:[%s6] sm:$0x1]
        %v408 = vlaneseq
        %v409 = vshrl.u32 %v408, 7
        %v410 = vsub.s32 0, %v409
        %v411 = vrot.slane %v406, %v410
        %v413 = vadd.f32 %v405, %v411
        %414 = vst.msk [vmem:[%s282] sm:$0xff] %vm384, %v413
        %s415 = sand.u32 %s186, 1
        %s416 = scalar_lea.sflag [#allocation3], %s415
        %s417 = sand.u32 %s186, 1
        %s418 = smul.addr %s417, 8
        %s419 = scalar_lea.vmem [#allocation2], %s418
        // Predicated region
        $region49: #{tpu_custom_call.1} parent=47 // pred_check
          %p420 = pneg %p196
        $region50: #{tpu_custom_call.1} parent=47 // pred_check_branch
          %422 = sbr.rel (%p420) target = $region52
        $region51: #{tpu_custom_call.1} parent=47 // pred_region
          %s424 = ssub.s32 128, 128
          %425 = vsyncadd %s416, %s424
          %s426 = smul.addr %s21, 128
          %s427 = scalar_lea.hbm %s7, %s426
          %s429 = sshll.u32 %s419, 4
          %s430 = int_to_ptr.vmem [resolvable:$true] %s429
          %432 = dma.vmem_to_hbm [thread:$0]  %s430, 128, %s427, %s416
        $region52: #{tpu_custom_call.1} parent=47 // pred_fallthru
          _
      $region48: #{tpu_custom_call.1} parent=5 // pred_fallthru
        _
      %p433 = scmp.le.s32.totalorder 2, %s16
      // Predicated region
      $region53: #{tpu_custom_call.1} parent=5 // pred_check
        %p434 = pneg %p433
      $region54: #{tpu_custom_call.1} parent=5 // pred_check_branch
        %436 = sbr.rel (%p434) target = $region56
      $region55: #{tpu_custom_call.1} parent=5 // pred_region
        %s437 = ssub.s32 %s16, 2
        // Predicated region
        $region57: #{tpu_custom_call.1} parent=55 // pred_check
          %p438 = pneg %p202
        $region58: #{tpu_custom_call.1} parent=55 // pred_check_branch
          %440 = sbr.rel (%p438) target = $region60
        $region59: #{tpu_custom_call.1} parent=55 // pred_region
          %s441 = sand.u32 %s187, 1
          %s442 = scalar_lea.sflag [#allocation3], %s441
          %s443 = sand.u32 %s187, 1
          %s444 = smul.addr %s443, 8
          %s445 = scalar_lea.vmem [#allocation2], %s444
          %446 = dma.done %s442, 128
        $region60: #{tpu_custom_call.1} parent=55 // pred_fallthru
          _
      $region56: #{tpu_custom_call.1} parent=5 // pred_fallthru
        _
    $region6: #{tpu_custom_call.1} parent=1 // loop_footer
      %s20 = sadd.s32 1, %s16
    $region7: #{tpu_custom_call.1} parent=1 // loop_footer_branch
      %15 = sbr.rel target = $region3
    $region8: #{tpu_custom_call.1} parent=1 // loop_exit
      _
    %447 = vsyncpa [#allocation3], 1
    %s448 = scalar_lea.sflag [#allocation3], 1
    %449 = vsyncpa %s448, 1

</llo_original>
